<compile_context>
chip_gen: v5e
topology: v5e:2x2
jax: 0.10.0
libtpu: 0.0.40
codegen_flags: <defaults>
</compile_context>

<pallas_src>
import jax
import jax.numpy as jnp
from jax.experimental import pallas as pl
from jax.experimental.pallas import tpu as pltpu


def _leaky_relu(h, slope=0.01):
    # matches torch.nn.LeakyReLU default negative_slope=0.01
    return jnp.where(h > 0, h, slope * h)


def _softplus(z, beta=1.0, threshold=20.0):
    # matches torch.nn.Softplus default (beta=1, threshold=20)
    safe = jnp.minimum(z, threshold)
    return jnp.where(z > threshold, z, jnp.log1p(jnp.exp(beta * safe)) / beta)


def mlp_kernel(x_ref,
               w1_ref, b1_ref,
               w2_ref, b2_ref,
               w3_ref, b3_ref,
               w4_ref, b4_ref,
               o_ref):
    # x_ref: (d_in, tm) -- batch on lanes, features on sublanes.
    x = x_ref[...].astype(jnp.float32)

    h = jnp.dot(w1_ref[...], x, preferred_element_type=jnp.float32) + b1_ref[...]
    h = _leaky_relu(h)

    h = jnp.dot(w2_ref[...], h, preferred_element_type=jnp.float32) + b2_ref[...]
    h = _leaky_relu(h)

    h = jnp.dot(w3_ref[...], h, preferred_element_type=jnp.float32) + b3_ref[...]
    h = _leaky_relu(h)

    z = jnp.dot(w4_ref[...], h, preferred_element_type=jnp.float32) + b4_ref[...]
    o_ref[...] = _softplus(z).astype(o_ref.dtype)   # (1, tm), lane-dense


def _round_up(n, m):
    return ((n + m - 1) // m) * m


def generalized_mom_model(x, params, *, tm=2048):
    """x: (N, d_in) float32 (bf16 also accepted; cast to f32 inside the kernel).

    params: dict with weights in PyTorch (out, in) layout and biases as (out, 1).
    Returns (N, 1) in x.dtype.
    """
    N, d_in = x.shape

    w1, b1 = params["w1"], params["b1"]
    w2, b2 = params["w2"], params["b2"]
    w3, b3 = params["w3"], params["b3"]
    w4, b4 = params["w4"], params["b4"]

    # Batch tile: multiple of 128 (lane width), no larger than the padded batch.
    tm = max(128, (int(tm) // 128) * 128)
    tm = min(tm, _round_up(N, 128))
    n_pad = _round_up(N, tm)

    # Put the batch on the lane (last) axis and zero-pad the tail tile.
    xt = x.T                                   # (d_in, N)
    if n_pad != N:
        xt = jnp.pad(xt, ((0, 0), (0, n_pad - N)))

    # Tiny weights/biases: full-array blocks with constant index maps.
    full = lambda a: pl.BlockSpec(a.shape, lambda i: (0,) * a.ndim)

    out = pl.pallas_call(
        mlp_kernel,
        out_shape=jax.ShapeDtypeStruct((1, n_pad), x.dtype),
        grid_spec=pltpu.PrefetchScalarGridSpec(
            num_scalar_prefetch=0,
            grid=(n_pad // tm,),
            in_specs=[
                pl.BlockSpec((d_in, tm), lambda i: (0, i)),
                full(w1), full(b1),
                full(w2), full(b2),
                full(w3), full(b3),
                full(w4), full(b4),
            ],
            out_specs=pl.BlockSpec((1, tm), lambda i: (0, i)),
        ),
        compiler_params=pltpu.CompilerParams(
            dimension_semantics=("parallel",)),
    )(xt, w1, b1, w2, b2, w3, b3, w4, b4)

    return out[:, :N].T                        # (N, 1)


def init_params(key, d_in, hidden=12):
    """Deterministic synthetic init (PyTorch-style uniform fan-in bounds).

    Weights are (out, in) -- same layout as torch Linear.weight -- so
    torch-exported weights can be used directly (biases reshaped to (out, 1)).
    """
    ks = jax.random.split(key, 8)

    def lin(kw, kb, fan_in, fan_out):
        bound = 1.0 / jnp.sqrt(jnp.float32(fan_in))
        w = jax.random.uniform(kw, (fan_out, fan_in), jnp.float32, -bound, bound)
        b = jax.random.uniform(kb, (fan_out, 1), jnp.float32, -bound, bound)
        return w, b

    w1, b1 = lin(ks[0], ks[1], d_in, hidden)
    w2, b2 = lin(ks[2], ks[3], hidden, hidden)
    w3, b3 = lin(ks[4], ks[5], hidden, hidden)
    w4, b4 = lin(ks[6], ks[7], hidden, 1)
    return dict(w1=w1, b1=b1, w2=w2, b2=b2, w3=w3, b3=b3, w4=w4, b4=b4)


def reference_forward(x, p):
    h = _leaky_relu(x @ p["w1"].T + p["b1"].T)
    h = _leaky_relu(h @ p["w2"].T + p["b2"].T)
    h = _leaky_relu(h @ p["w3"].T + p["b3"].T)
    return _softplus(h @ p["w4"].T + p["b4"].T)


if __name__ == "__main__":
    key = jax.random.PRNGKey(0)
    k_x, k_x2, k_p = jax.random.split(key, 3)

    d_in = 4
    params = init_params(k_p, d_in)

    # Small demo batch; exercises the padded-tail path (64 -> one 128-wide tile).
    N = 64
    x = jax.random.normal(k_x, (N, d_in), jnp.float32)
    out = jax.block_until_ready(generalized_mom_model(x, params))
    ref = reference_forward(x, params)
    assert out.shape == (N, 1)
    assert jnp.allclose(out, ref, atol=1e-5, rtol=1e-5), "mismatch vs JAX reference"

    # Second check: non-divisible batch with a multi-step grid (tm=128 -> grid=3).
    N2 = 300
    x2 = jax.random.normal(k_x2, (N2, d_in), jnp.float32)
    out2 = jax.block_until_ready(generalized_mom_model(x2, params, tm=128))
    ref2 = reference_forward(x2, params)
    assert out2.shape == (N2, 1)
    assert jnp.allclose(out2, ref2, atol=1e-5, rtol=1e-5), "mismatch vs JAX reference"

    print("KERNEL_OK")
</pallas_src>

<mosaic_0001>
module attributes {stable_mosaic.version = 11 : i64} {
  func.func @mlp_kernel(%arg0: i32, %arg1: memref<4x128xf32, #tpu.memory_space<vmem>>, %arg2: memref<12x4xf32, #tpu.memory_space<vmem>>, %arg3: memref<12x1xf32, #tpu.memory_space<vmem>>, %arg4: memref<12x12xf32, #tpu.memory_space<vmem>>, %arg5: memref<12x1xf32, #tpu.memory_space<vmem>>, %arg6: memref<12x12xf32, #tpu.memory_space<vmem>>, %arg7: memref<12x1xf32, #tpu.memory_space<vmem>>, %arg8: memref<1x12xf32, #tpu.memory_space<vmem>>, %arg9: memref<1x1xf32, #tpu.memory_space<vmem>>, %arg10: memref<1x128xf32, #tpu.memory_space<vmem>>) attributes {dimension_semantics = [#tpu.dimension_semantics<parallel>], iteration_bounds = array<i64: 1>, scalar_prefetch = 0 : i64, scratch_operands = 0 : i64, tpu.core_type = #tpu.core_type<tc>, window_params = [{transform_indices = @transform_0, window_bounds = array<i64: 4, 128>}, {pipeline_mode = #tpu.pipeline_mode<synchronous>, transform_indices = @transform_1, window_bounds = array<i64: 12, 4>}, {pipeline_mode = #tpu.pipeline_mode<synchronous>, transform_indices = @transform_2, window_bounds = array<i64: 12, 1>}, {pipeline_mode = #tpu.pipeline_mode<synchronous>, transform_indices = @transform_3, window_bounds = array<i64: 12, 12>}, {pipeline_mode = #tpu.pipeline_mode<synchronous>, transform_indices = @transform_4, window_bounds = array<i64: 12, 1>}, {pipeline_mode = #tpu.pipeline_mode<synchronous>, transform_indices = @transform_5, window_bounds = array<i64: 12, 12>}, {pipeline_mode = #tpu.pipeline_mode<synchronous>, transform_indices = @transform_6, window_bounds = array<i64: 12, 1>}, {pipeline_mode = #tpu.pipeline_mode<synchronous>, transform_indices = @transform_7, window_bounds = array<i64: 1, 12>}, {pipeline_mode = #tpu.pipeline_mode<synchronous>, transform_indices = @transform_8, window_bounds = array<i64: 1, 1>}, {transform_indices = @transform_9, window_bounds = array<i64: 1, 128>}]} {
    %c0 = arith.constant 0 : index
    %c0_0 = arith.constant 0 : index
    %0 = vector.load %arg1[%c0, %c0_0] : memref<4x128xf32, #tpu.memory_space<vmem>>, vector<4x128xf32>
    %c0_1 = arith.constant 0 : index
    %c0_2 = arith.constant 0 : index
    %1 = vector.load %arg2[%c0_1, %c0_2] : memref<12x4xf32, #tpu.memory_space<vmem>>, vector<12x4xf32>
    %cst = arith.constant dense<0.000000e+00> : vector<12x128xf32>
    %2 = tpu.matmul %1, %0, %cst {dimension_numbers = #tpu.dot_dimension_numbers<[1], [0], [0], [1], [0, 0, 1, 1], [], []>} : vector<12x4xf32>, vector<4x128xf32>, vector<12x128xf32> -> vector<12x128xf32>
    %c0_3 = arith.constant 0 : index
    %c0_4 = arith.constant 0 : index
    %3 = vector.load %arg3[%c0_3, %c0_4] : memref<12x1xf32, #tpu.memory_space<vmem>>, vector<12x1xf32>
    %4 = vector.broadcast %3 : vector<12x1xf32> to vector<12x128xf32>
    %5 = arith.addf %2, %4 : vector<12x128xf32>
    %cst_5 = arith.constant 0.000000e+00 : f32
    %6 = vector.broadcast %cst_5 : f32 to vector<12x128xf32>
    %7 = arith.cmpf ogt, %5, %6 : vector<12x128xf32>
    %cst_6 = arith.constant 0.00999999977 : f32
    %8 = vector.broadcast %cst_6 : f32 to vector<12x128xf32>
    %9 = arith.mulf %8, %5 : vector<12x128xf32>
    %10 = arith.select %7, %5, %9 : vector<12x128xi1>, vector<12x128xf32>
    %c0_7 = arith.constant 0 : index
    %c0_8 = arith.constant 0 : index
    %11 = vector.load %arg4[%c0_7, %c0_8] : memref<12x12xf32, #tpu.memory_space<vmem>>, vector<12x12xf32>
    %cst_9 = arith.constant dense<0.000000e+00> : vector<12x128xf32>
    %12 = tpu.matmul %11, %10, %cst_9 {dimension_numbers = #tpu.dot_dimension_numbers<[1], [0], [0], [1], [0, 0, 1, 1], [], []>} : vector<12x12xf32>, vector<12x128xf32>, vector<12x128xf32> -> vector<12x128xf32>
    %c0_10 = arith.constant 0 : index
    %c0_11 = arith.constant 0 : index
    %13 = vector.load %arg5[%c0_10, %c0_11] : memref<12x1xf32, #tpu.memory_space<vmem>>, vector<12x1xf32>
    %14 = vector.broadcast %13 : vector<12x1xf32> to vector<12x128xf32>
    %15 = arith.addf %12, %14 : vector<12x128xf32>
    %cst_12 = arith.constant 0.000000e+00 : f32
    %16 = vector.broadcast %cst_12 : f32 to vector<12x128xf32>
    %17 = arith.cmpf ogt, %15, %16 : vector<12x128xf32>
    %cst_13 = arith.constant 0.00999999977 : f32
    %18 = vector.broadcast %cst_13 : f32 to vector<12x128xf32>
    %19 = arith.mulf %18, %15 : vector<12x128xf32>
    %20 = arith.select %17, %15, %19 : vector<12x128xi1>, vector<12x128xf32>
    %c0_14 = arith.constant 0 : index
    %c0_15 = arith.constant 0 : index
    %21 = vector.load %arg6[%c0_14, %c0_15] : memref<12x12xf32, #tpu.memory_space<vmem>>, vector<12x12xf32>
    %cst_16 = arith.constant dense<0.000000e+00> : vector<12x128xf32>
    %22 = tpu.matmul %21, %20, %cst_16 {dimension_numbers = #tpu.dot_dimension_numbers<[1], [0], [0], [1], [0, 0, 1, 1], [], []>} : vector<12x12xf32>, vector<12x128xf32>, vector<12x128xf32> -> vector<12x128xf32>
    %c0_17 = arith.constant 0 : index
    %c0_18 = arith.constant 0 : index
    %23 = vector.load %arg7[%c0_17, %c0_18] : memref<12x1xf32, #tpu.memory_space<vmem>>, vector<12x1xf32>
    %24 = vector.broadcast %23 : vector<12x1xf32> to vector<12x128xf32>
    %25 = arith.addf %22, %24 : vector<12x128xf32>
    %cst_19 = arith.constant 0.000000e+00 : f32
    %26 = vector.broadcast %cst_19 : f32 to vector<12x128xf32>
    %27 = arith.cmpf ogt, %25, %26 : vector<12x128xf32>
    %cst_20 = arith.constant 0.00999999977 : f32
    %28 = vector.broadcast %cst_20 : f32 to vector<12x128xf32>
    %29 = arith.mulf %28, %25 : vector<12x128xf32>
    %30 = arith.select %27, %25, %29 : vector<12x128xi1>, vector<12x128xf32>
    %c0_21 = arith.constant 0 : index
    %c0_22 = arith.constant 0 : index
    %31 = vector.load %arg8[%c0_21, %c0_22] : memref<1x12xf32, #tpu.memory_space<vmem>>, vector<1x12xf32>
    %cst_23 = arith.constant dense<0.000000e+00> : vector<1x128xf32>
    %32 = tpu.matmul %31, %30, %cst_23 {dimension_numbers = #tpu.dot_dimension_numbers<[1], [0], [0], [1], [0, 0, 1, 1], [], []>} : vector<1x12xf32>, vector<12x128xf32>, vector<1x128xf32> -> vector<1x128xf32>
    %c0_24 = arith.constant 0 : index
    %c0_25 = arith.constant 0 : index
    %33 = vector.load %arg9[%c0_24, %c0_25] : memref<1x1xf32, #tpu.memory_space<vmem>>, vector<1x1xf32>
    %34 = vector.broadcast %33 : vector<1x1xf32> to vector<1x128xf32>
    %35 = arith.addf %32, %34 : vector<1x128xf32>
    %cst_26 = arith.constant 2.000000e+01 : f32
    %36 = vector.broadcast %cst_26 : f32 to vector<1x128xf32>
    %37 = arith.minimumf %35, %36 : vector<1x128xf32>
    %cst_27 = arith.constant 2.000000e+01 : f32
    %38 = vector.broadcast %cst_27 : f32 to vector<1x128xf32>
    %39 = arith.cmpf ogt, %35, %38 : vector<1x128xf32>
    %cst_28 = arith.constant 1.000000e+00 : f32
    %40 = vector.broadcast %cst_28 : f32 to vector<1x128xf32>
    %41 = arith.mulf %40, %37 : vector<1x128xf32>
    %42 = math.exp %41 : vector<1x128xf32>
    %43 = math.log1p %42 : vector<1x128xf32>
    %cst_29 = arith.constant 1.000000e+00 : f32
    %44 = vector.broadcast %cst_29 : f32 to vector<1x128xf32>
    %45 = arith.divf %43, %44 : vector<1x128xf32>
    %46 = arith.select %39, %35, %45 : vector<1x128xi1>, vector<1x128xf32>
    %c0_30 = arith.constant 0 : index
    %c0_31 = arith.constant 0 : index
    %47 = vector.load %arg10[%c0_30, %c0_31] : memref<1x128xf32, #tpu.memory_space<vmem>>, vector<1x128xf32>
    tpu.vector_store %arg10[%c0_30, %c0_31], %46 {strides = array<i32>} : memref<1x128xf32, #tpu.memory_space<vmem>>, vector<1x128xf32>,
    return
  }
  func.func @transform_0(%arg0: i32) -> (i32, i32) {
    %c0_i32 = arith.constant 0 : i32
    %c0_i32_0 = arith.constant 0 : i32
    return %c0_i32, %arg0 : i32, i32
  }
  func.func @transform_1(%arg0: i32) -> (i32, i32) {
    %c0_i32 = arith.constant 0 : i32
    %c0_i32_0 = arith.constant 0 : i32
    %c0_i32_1 = arith.constant 0 : i32
    return %c0_i32, %c0_i32_0 : i32, i32
  }
  func.func @transform_2(%arg0: i32) -> (i32, i32) {
    %c0_i32 = arith.constant 0 : i32
    %c0_i32_0 = arith.constant 0 : i32
    %c0_i32_1 = arith.constant 0 : i32
    return %c0_i32, %c0_i32_0 : i32, i32
  }
  func.func @transform_3(%arg0: i32) -> (i32, i32) {
    %c0_i32 = arith.constant 0 : i32
    %c0_i32_0 = arith.constant 0 : i32
    %c0_i32_1 = arith.constant 0 : i32
    return %c0_i32, %c0_i32_0 : i32, i32
  }
  func.func @transform_4(%arg0: i32) -> (i32, i32) {
    %c0_i32 = arith.constant 0 : i32
    %c0_i32_0 = arith.constant 0 : i32
    %c0_i32_1 = arith.constant 0 : i32
    return %c0_i32, %c0_i32_0 : i32, i32
  }
  func.func @transform_5(%arg0: i32) -> (i32, i32) {
    %c0_i32 = arith.constant 0 : i32
    %c0_i32_0 = arith.constant 0 : i32
    %c0_i32_1 = arith.constant 0 : i32
    return %c0_i32, %c0_i32_0 : i32, i32
  }
  func.func @transform_6(%arg0: i32) -> (i32, i32) {
    %c0_i32 = arith.constant 0 : i32
    %c0_i32_0 = arith.constant 0 : i32
    %c0_i32_1 = arith.constant 0 : i32
    return %c0_i32, %c0_i32_0 : i32, i32
  }
  func.func @transform_7(%arg0: i32) -> (i32, i32) {
    %c0_i32 = arith.constant 0 : i32
    %c0_i32_0 = arith.constant 0 : i32
    %c0_i32_1 = arith.constant 0 : i32
    return %c0_i32, %c0_i32_0 : i32, i32
  }
  func.func @transform_8(%arg0: i32) -> (i32, i32) {
    %c0_i32 = arith.constant 0 : i32
    %c0_i32_0 = arith.constant 0 : i32
    %c0_i32_1 = arith.constant 0 : i32
    return %c0_i32, %c0_i32_0 : i32, i32
  }
  func.func @transform_9(%arg0: i32) -> (i32, i32) {
    %c0_i32 = arith.constant 0 : i32
    %c0_i32_0 = arith.constant 0 : i32
    return %c0_i32, %arg0 : i32, i32
  }
}

</mosaic_0001>

<llo_original>
// kernel: tpu_custom_call.1
$region0: #{tpu_custom_call.1}
  #allocation0 [shape = 'u32[]', space=smem, size = 0x4, offset = 0x4, fixed_abs, tag = 'smem constant byte address 0x4 - core index']
  #allocation1 [shape = 'u32[72,128]{1,0:T(1,128)}', space=vmem, size = 0x9000, scoped, tag = 'internal scratch']
  #allocation2 [shape = 'f32[1,1]{1,0:T(1,128)S(1)}', space=vmem, size = 0x200, scoped, tag = 'scoped memory for tpu_custom_call.1']
  %s0 = inlined_call_operand.vmem [shape: f32[4,128], index: 0, kind: input, shape index: {}]
  %s1 = inlined_call_operand.vmem [shape: f32[12,4], index: 1, kind: input, shape index: {}]
  %s2 = inlined_call_operand.vmem [shape: f32[12,1], index: 2, kind: input, shape index: {}]
  %s3 = inlined_call_operand.vmem [shape: f32[12,12], index: 3, kind: input, shape index: {}]
  %s4 = inlined_call_operand.vmem [shape: f32[12,1], index: 4, kind: input, shape index: {}]
  %s5 = inlined_call_operand.vmem [shape: f32[12,12], index: 5, kind: input, shape index: {}]
  %s6 = inlined_call_operand.vmem [shape: f32[12,1], index: 6, kind: input, shape index: {}]
  %s7 = inlined_call_operand.vmem [shape: f32[1,12], index: 7, kind: input, shape index: {}]
  %s8 = inlined_call_operand.<no memory space> [shape: f32[1,1], index: 8, kind: input, shape index: {}]
  %s9 = inlined_call_operand.hbm [shape: f32[1,128], index: 9, kind: output, shape index: {}]
  %s10 = sld [smem:[#allocation0]]
  $region46: #{tpu_custom_call.1} parent=0
    _
  %s12 = ssub.s32 1, %s10
  %s13 = scalar_select 0, %s12, %s10
  %v14 = vstv %s8
  %15 = vst [vmem:[#allocation2] sm:$0x1] %v14
  $region1: #{tpu_custom_call.1} parent=0
    #allocation3 [shape = 'u8[512]{0}', space=vmem, size = 0x400, scoped, tag = 'output window, operand 0, single buffered']
    #allocation4 [shape = 's32[1]{0}', space=sflag, size = 0x4, scoped, tag = 'scoped memory for tpu_custom_call.1']
    %16 = vsyncpa [#allocation4], 0
    // Predicated region
    $region2: #{tpu_custom_call.1} parent=1 // pred_check
      _
    $region3: #{tpu_custom_call.1} parent=1 // pred_check_branch
      %18 = sbr.rel (0) target = $region5
    $region4: #{tpu_custom_call.1} parent=1 // pred_region
      _
    $region5: #{tpu_custom_call.1} parent=1 // pred_fallthru
      _
    // Predicated region
    $region6: #{tpu_custom_call.1} parent=1 // pred_check
      _
    $region7: #{tpu_custom_call.1} parent=1 // pred_check_branch
      %20 = sbr.rel (0) target = $region9
    $region8: #{tpu_custom_call.1} parent=1 // pred_region
      _
    $region9: #{tpu_custom_call.1} parent=1 // pred_fallthru
      _
    // Predicated region
    $region10: #{tpu_custom_call.1} parent=1 // pred_check
      _
    $region11: #{tpu_custom_call.1} parent=1 // pred_check_branch
      %22 = sbr.rel (0) target = $region13
    $region12: #{tpu_custom_call.1} parent=1 // pred_region
      _
    $region13: #{tpu_custom_call.1} parent=1 // pred_fallthru
      _
    // Predicated region
    $region14: #{tpu_custom_call.1} parent=1 // pred_check
      _
    $region15: #{tpu_custom_call.1} parent=1 // pred_check_branch
      %24 = sbr.rel (0) target = $region17
    $region16: #{tpu_custom_call.1} parent=1 // pred_region
      _
    $region17: #{tpu_custom_call.1} parent=1 // pred_fallthru
      _
    // Predicated region
    $region18: #{tpu_custom_call.1} parent=1 // pred_check
      _
    $region19: #{tpu_custom_call.1} parent=1 // pred_check_branch
      %26 = sbr.rel (0) target = $region21
    $region20: #{tpu_custom_call.1} parent=1 // pred_region
      _
    $region21: #{tpu_custom_call.1} parent=1 // pred_fallthru
      _
    // Predicated region
    $region22: #{tpu_custom_call.1} parent=1 // pred_check
      _
    $region23: #{tpu_custom_call.1} parent=1 // pred_check_branch
      %28 = sbr.rel (0) target = $region25
    $region24: #{tpu_custom_call.1} parent=1 // pred_region
      _
    $region25: #{tpu_custom_call.1} parent=1 // pred_fallthru
      _
    // Predicated region
    $region26: #{tpu_custom_call.1} parent=1 // pred_check
      _
    $region27: #{tpu_custom_call.1} parent=1 // pred_check_branch
      %30 = sbr.rel (0) target = $region29
    $region28: #{tpu_custom_call.1} parent=1 // pred_region
      _
    $region29: #{tpu_custom_call.1} parent=1 // pred_fallthru
      _
    // Predicated region
    $region30: #{tpu_custom_call.1} parent=1 // pred_check
      _
    $region31: #{tpu_custom_call.1} parent=1 // pred_check_branch
      %32 = sbr.rel (0) target = $region33
    $region32: #{tpu_custom_call.1} parent=1 // pred_region
      _
    $region33: #{tpu_custom_call.1} parent=1 // pred_fallthru
      _
    // Predicated region
    $region34: #{tpu_custom_call.1} parent=1 // pred_check
      _
    $region35: #{tpu_custom_call.1} parent=1 // pred_check_branch
      %34 = sbr.rel (0) target = $region37
    $region36: #{tpu_custom_call.1} parent=1 // pred_region
      _
    $region37: #{tpu_custom_call.1} parent=1 // pred_fallthru
      _
    %v35 = vld [vmem:[%s0] sm:$0xf]
    %v36 = vld [vmem:[%s1] sm:$0xff]
    %v37 = vld [vmem:[%s1 + $0x8] sm:$0xf]
    %v38 = vld [vmem:[%s2] sm:$0xff]
    %v39 = vld [vmem:[%s2 + $0x8] sm:$0xf]
    %41 = vset.pattern.permute.xlu0 0
    %42 = vperm.xlu0 %41, %v38
    %v43 = vpop.permute.xlu0 %42
    %46 = vset.pattern.permute.xlu0 0
    %47 = vperm.xlu0 %46, %v39
    %v48 = vpop.permute.xlu0 %47
    %vm50 = vcmask 31744
    %v52 = vsel %vm50, %v36, 0
    %v55 = vsel %vm50, %v37, 0
    %vm57 = vcmask 1043456
    %v59 = vsel %vm57, %v35, 0
    %61 = vmatpush.msra.mxu0 0.0
    %62 = vmatpush.msra.mxu0 0.0
    %63 = vmatpush.msra.mxu0 0.0
    %64 = vmatpush.msra.mxu0 0.0
    %65 = vmatpush.msra.mxu0 0.0
    %66 = vmatpush.msra.mxu0 0.0
    %67 = vmatpush.msra.mxu0 0.0
    %68 = vmatpush.msra.mxu0 0.0
    %69 = vmatpush.msra.mxu0 0.0
    %70 = vmatpush.msra.mxu0 0.0
    %71 = vmatpush.msra.mxu0 0.0
    %72 = vmatpush.msra.mxu0 0.0
    %73 = vmatpush.msra.mxu0 0.0
    %74 = vmatpush.msra.mxu0 0.0
    %75 = vmatpush.msra.mxu0 0.0
    %76 = vmatpush.msra.mxu0 %v59
    %77 = vmatmul.f32.gmra.mxu0 %v52
    %v78 = vpop.f32.mrf.mxu0
    %v79 = vadd.f32 %v43, %v78
    %80 = vmatmul.f32.gmra.mxu0 %v55
    %v81 = vpop.f32.mrf.mxu0
    %v82 = vadd.f32 %v48, %v81
    %83 = vdwg.mxu0
    %vm84 = vcmp.gt.f32.partialorder %v79, 0.0
    %vm85 = vcmp.gt.f32.partialorder %v82, 0.0
    %v86 = vmul.f32 %v79, 0.01
    %v87 = vmul.f32 %v82, 0.01
    %v88 = vsel %vm84, %v79, %v86
    %v89 = vsel %vm85, %v82, %v87
    %v90 = vld [vmem:[%s3] sm:$0xff]
    %v91 = vld [vmem:[%s3 + $0x8] sm:$0xf]
    %v92 = vld [vmem:[%s4] sm:$0xff]
    %v93 = vld [vmem:[%s4 + $0x8] sm:$0xf]
    %95 = vset.pattern.permute.xlu0 0
    %96 = vperm.xlu0 %95, %v92
    %v97 = vpop.permute.xlu0 %96
    %100 = vset.pattern.permute.xlu0 0
    %101 = vperm.xlu0 %100, %v93
    %v102 = vpop.permute.xlu0 %101
    %vm104 = vcmask 97280
    %v106 = vsel %vm104, %v90, 0
    %v109 = vsel %vm104, %v91, 0
    %v112 = vsel %vm57, %v89, 0
    %114 = vmatpush.msra.mxu0 0.0
    %115 = vmatpush.msra.mxu0 0.0
    %116 = vmatpush.msra.mxu0 0.0
    %117 = vmatpush.msra.mxu0 0.0
    %118 = vmatpush.msra.mxu0 0.0
    %119 = vmatpush.msra.mxu0 0.0
    %120 = vmatpush.msra.mxu0 0.0
    %121 = vmatpush.msra.mxu0 0.0
    %122 = vmatpush.msra.mxu0 0.0
    %123 = vmatpush.msra.mxu0 0.0
    %124 = vmatpush.msra.mxu0 0.0
    %125 = vmatpush.msra.mxu0 0.0
    %126 = vmatpush.msra.mxu0 0.0
    %127 = vmatpush.msra.mxu0 0.0
    %128 = vmatpush.msra.mxu0 %v112
    %129 = vmatpush.msra.mxu0 %v88
    %130 = vmatmul.f32.gmra.mxu0 %v106
    %v131 = vpop.f32.mrf.mxu0
    %v132 = vadd.f32 %v97, %v131
    %133 = vmatmul.f32.gmra.mxu0 %v109
    %v134 = vpop.f32.mrf.mxu0
    %v135 = vadd.f32 %v102, %v134
    %136 = vdwg.mxu0
    %vm137 = vcmp.gt.f32.partialorder %v132, 0.0
    %vm138 = vcmp.gt.f32.partialorder %v135, 0.0
    %v139 = vmul.f32 %v132, 0.01
    %v140 = vmul.f32 %v135, 0.01
    %v141 = vsel %vm137, %v132, %v139
    %v142 = vsel %vm138, %v135, %v140
    %v143 = vld [vmem:[%s5] sm:$0xff]
    %v144 = vld [vmem:[%s5 + $0x8] sm:$0xf]
    %v145 = vld [vmem:[%s6] sm:$0xff]
    %v146 = vld [vmem:[%s6 + $0x8] sm:$0xf]
    %148 = vset.pattern.permute.xlu0 0
    %149 = vperm.xlu0 %148, %v145
    %v150 = vpop.permute.xlu0 %149
    %153 = vset.pattern.permute.xlu0 0
    %154 = vperm.xlu0 %153, %v146
    %v155 = vpop.permute.xlu0 %154
    %v158 = vsel %vm104, %v143, 0
    %v161 = vsel %vm104, %v144, 0
    %v164 = vsel %vm57, %v142, 0
    %166 = vmatpush.msra.mxu0 0.0
    %167 = vmatpush.msra.mxu0 0.0
    %168 = vmatpush.msra.mxu0 0.0
    %169 = vmatpush.msra.mxu0 0.0
    %170 = vmatpush.msra.mxu0 0.0
    %171 = vmatpush.msra.mxu0 0.0
    %172 = vmatpush.msra.mxu0 0.0
    %173 = vmatpush.msra.mxu0 0.0
    %174 = vmatpush.msra.mxu0 0.0
    %175 = vmatpush.msra.mxu0 0.0
    %176 = vmatpush.msra.mxu0 0.0
    %177 = vmatpush.msra.mxu0 0.0
    %178 = vmatpush.msra.mxu0 0.0
    %179 = vmatpush.msra.mxu0 0.0
    %180 = vmatpush.msra.mxu0 %v164
    %181 = vmatpush.msra.mxu0 %v141
    %182 = vmatmul.f32.gmra.mxu0 %v158
    %v183 = vpop.f32.mrf.mxu0
    %v184 = vadd.f32 %v150, %v183
    %185 = vmatmul.f32.gmra.mxu0 %v161
    %v186 = vpop.f32.mrf.mxu0
    %v187 = vadd.f32 %v155, %v186
    %188 = vdwg.mxu0
    %vm189 = vcmp.gt.f32.partialorder %v184, 0.0
    %vm190 = vcmp.gt.f32.partialorder %v187, 0.0
    %v191 = vmul.f32 %v184, 0.01
    %v192 = vmul.f32 %v187, 0.01
    %v193 = vsel %vm189, %v184, %v191
    %v194 = vsel %vm190, %v187, %v192
    %v195 = vld [vmem:[%s7] sm:$0x1]
    %v196 = vld [vmem:[#allocation2] sm:$0x1]
    %198 = vset.pattern.permute.xlu0 0
    %199 = vperm.xlu0 %198, %v196
    %v200 = vpop.permute.xlu0 %199
    %v202 = vperm.slane %v200, 0
    %v204 = vsel %vm104, %v195, 0
    %v207 = vsel %vm57, %v194, 0
    %209 = vmatpush.msra.mxu0 0.0
    %210 = vmatpush.msra.mxu0 0.0
    %211 = vmatpush.msra.mxu0 0.0
    %212 = vmatpush.msra.mxu0 0.0
    %213 = vmatpush.msra.mxu0 0.0
    %214 = vmatpush.msra.mxu0 0.0
    %215 = vmatpush.msra.mxu0 0.0
    %216 = vmatpush.msra.mxu0 0.0
    %217 = vmatpush.msra.mxu0 0.0
    %218 = vmatpush.msra.mxu0 0.0
    %219 = vmatpush.msra.mxu0 0.0
    %220 = vmatpush.msra.mxu0 0.0
    %221 = vmatpush.msra.mxu0 0.0
    %222 = vmatpush.msra.mxu0 0.0
    %223 = vmatpush.msra.mxu0 %v207
    %224 = vmatpush.msra.mxu0 %v193
    %225 = vmatmul.f32.gmra.mxu0 %v204
    %v226 = vpop.f32.mrf.mxu0
    %v227 = vadd.f32 %v202, %v226
    %228 = vdwg.mxu0
    %v229 = vmin.f32 %v227, 20.0
    %vm230 = vcmp.gt.f32.partialorder %v227, 20.0
    %v231 = vmul.f32 %v229, 1.442695
    %v232 = vpow.pop %v231
    %v233 = vadd.f32 %v232, 1.0
    %v234 = vlog2.pop %v233
    %v235 = vmul.f32 %v234, 0.6931472
    %v236 = vmul.f32 -0.5, %v232
    %v237 = vadd.f32 %v236, 1.0
    %v238 = vmul.f32 %v237, %v232
    %v239 = vand.u32 2147483647, %v232
    %vm240 = vcmp.lt.f32.partialorder %v239, 0.0004427343
    %v241 = vsel %vm240, %v238, %v235
    %v242 = vsel %vm230, %v227, %v241
    %243 = vst [vmem:[#allocation3] sm:$0x1] %v242
    // Predicated region
    $region38: #{tpu_custom_call.1} parent=1 // pred_check
      _
    $region39: #{tpu_custom_call.1} parent=1 // pred_check_branch
      %245 = sbr.rel (0) target = $region41
    $region40: #{tpu_custom_call.1} parent=1 // pred_region
      %247 = vsyncadd [#allocation4], 0
      %s249 = sshll.u32 [#allocation3], 4
      %s250 = int_to_ptr.vmem [resolvable:$true] %s249
      %s251 = sshll.u32 %s9, 4
      %s252 = int_to_ptr.hbm [resolvable:$true] %s251
      %254 = dma.vmem_to_hbm [thread:$0]  %s250, 16, %s252, [#allocation4]
    $region41: #{tpu_custom_call.1} parent=1 // pred_fallthru
      _
    // Predicated region
    $region42: #{tpu_custom_call.1} parent=1 // pred_check
      _
    $region43: #{tpu_custom_call.1} parent=1 // pred_check_branch
      %256 = sbr.rel (0) target = $region45
    $region44: #{tpu_custom_call.1} parent=1 // pred_region
      %258 = dma.done [#allocation4], 16
    $region45: #{tpu_custom_call.1} parent=1 // pred_fallthru
      _
    %259 = vsyncpa [#allocation4], 1

</llo_original>
